<compile_context>
chip_gen: v5e
topology: v5e:2x2
jax: 0.10.0
libtpu: 0.0.40
codegen_flags: <defaults>
</compile_context>

<pallas_src>
import functools

import jax
import jax.numpy as jnp
from jax.experimental import pallas as pl
from jax.experimental.pallas import tpu as pltpu


def _conv_branch_kernel(xcol_ref, wbd_ref, g_ref, gb_ref, o_ref, *,
                        batch: int, t_out: int, m: int, cout: int,
                        pool_h, eps: float):
    """Fused conv (one matmul) + BatchNorm2d + AdaptiveMaxPool + tanh.

    # layout (all lane-dense, last dim = Cout*m):
    #   xcol_ref: (B*t_out, K*Cin*m)   bf16   im2col'ed input (taps folded)
    #   wbd_ref : (K*Cin*m, Cout*m)    bf16   block-diagonal conv weight
    #   g_ref   : (Cout*m, Cout*m)     f32    0/1 group-broadcast matrix
    #   gb_ref  : (2, Cout*m)          f32    [gamma, beta] repeated per region
    #   o_ref   : (B*H, Cout*m)        f32    H = pool_h (or t_out if no pool)
    """
    cm = cout * m

    # --- dilated conv as a single MXU matmul, f32 accumulation ---------------
    y = jnp.dot(xcol_ref[...], wbd_ref[...],
                preferred_element_type=jnp.float32)          # (B*t_out, Cout*m)

    # --- BatchNorm2d (training-mode forward), one pass over y ----------------
    # Per-channel stats: reduce over rows (sublanes), then sum the m lanes of
    # each channel group *and* broadcast back to every lane of the group with
    # one tiny matmul against the precomputed 0/1 group matrix (MXU slot idle).
    s1 = jnp.sum(y, axis=0, keepdims=True)                   # (1, Cout*m)
    s2 = jnp.sum(y * y, axis=0, keepdims=True)               # (1, Cout*m)
    sums = jnp.dot(jnp.concatenate([s1, s2], axis=0), g_ref[...],
                   preferred_element_type=jnp.float32)       # (2, Cout*m)
    inv_n = 1.0 / float(batch * t_out * m)                   # biased stats (PyTorch)
    mean = sums[0:1] * inv_n
    # clamp: E[y^2] - mean^2 can cancel slightly negative in f32 at scale
    var = jnp.maximum(sums[1:2] * inv_n - mean * mean, 0.0)
    gb = gb_ref[...]
    scale = gb[0:1] * jax.lax.rsqrt(var + eps)               # gamma folded in (EUP)
    shift = gb[1:2] - mean * scale                           # beta folded in
    y = y * scale + shift                                    # single affine pass

    # --- AdaptiveMaxPool2d((pool_h, m)): width already m -> pool over T only --
    if pool_h is None:
        o_ref[...] = jnp.tanh(y)                             # (B*t_out, Cout*m)
    elif t_out % pool_h == 0:
        # vectorized pooling: one reshape + one max + one unmasked store
        chunk = t_out // pool_h
        yp = jnp.max(y.reshape(batch, pool_h, chunk, cm), axis=2)   # (B, pool_h, cm)
        o_ref[...] = jnp.tanh(yp.reshape(batch * pool_h, cm))
    else:
        # ragged fallback (uneven adaptive windows): write rows directly
        for b in range(batch):
            base = b * t_out
            for i in range(pool_h):
                s = (i * t_out) // pool_h
                e = -((-(i + 1) * t_out) // pool_h)          # ceil((i+1)*T/pool_h)
                row = jnp.max(y[base + s:base + e, :], axis=0, keepdims=True)
                o_ref[pl.ds(b * pool_h + i, 1), :] = jnp.tanh(row)


def prepare_conv_branch_constants(conv_w, bn_gamma, bn_beta, *, m: int):
    """Weight-derived constants (build once per weight update, reuse per step).

    Returns (w_bd bf16 (K*Cin*m, Cout*m), G f32 (Cout*m, Cout*m), gb f32 (2, Cout*m)).
    """
    cout, cin, K, _ = conv_w.shape
    cm = cout * m
    # block-diagonal conv weight via kron (no explicit 5-D f32 intermediate)
    w_flat = jnp.transpose(conv_w[..., 0].astype(jnp.float32),
                           (2, 1, 0)).reshape(K * cin, cout)         # (K*Cin, Cout)
    w_bd = jnp.kron(w_flat, jnp.eye(m, dtype=jnp.float32)
                    ).astype(jnp.bfloat16)                            # (K*Cin*m, Cout*m)
    # 0/1 group-broadcast matrix (constant of cout, m) -- ~64 KiB at cm=128
    grp = jnp.arange(cm, dtype=jnp.int32) // m
    G = (grp[:, None] == grp[None, :]).astype(jnp.float32)            # (cm, cm)
    gb = jnp.stack([jnp.repeat(bn_gamma.astype(jnp.float32), m),
                    jnp.repeat(bn_beta.astype(jnp.float32), m)], axis=0)  # (2, cm)
    return w_bd, G, gb


def conv_branch(x_nchw, conv_w, conv_b, bn_gamma, bn_beta, *,
                dilation_factor: int = 2, hidP=1, isPool: bool = True,
                eps: float = 1e-5):
    """Wrapper: x_nchw (B, Cin, T, m), conv_w (Cout, Cin, K, 1) -> (B, Cout*H, m)."""
    # A per-channel constant added before training-mode BatchNorm is exactly
    # cancelled by the mean subtraction -> the conv bias is dead compute.
    # TODO(synk): if an eval-mode / running-stats BatchNorm forward is ever
    # added, the conv bias must be restored (and running-stat buffer updates,
    # a training-time side effect that does not affect the output, modeled).
    del conv_b
    B, cin, T, m = x_nchw.shape
    cout, _, K, _ = conv_w.shape
    t_out = T - dilation_factor * (K - 1)
    pool_h = hidP if (isPool and hidP is not None) else None
    H = pool_h if pool_h is not None else t_out
    cm = cout * m

    # glue (XLA, outside the kernel): im2col over the K taps with m innermost,
    # cast to bf16 FIRST so the largest intermediate is 2 B/elem.
    x = x_nchw.astype(jnp.bfloat16)
    taps = [x[:, :, p * dilation_factor: p * dilation_factor + t_out, :]
            for p in range(K)]                               # K x (B, Cin, t_out, m)
    xcol = jnp.stack(taps, axis=1)                           # (B, K, Cin, t_out, m)
    xcol = jnp.transpose(xcol, (0, 3, 1, 2, 4))              # (B, t_out, K, Cin, m)
    xcol = xcol.reshape(B * t_out, K * cin * m)

    # weight-derived constants (hoist this call out of the step at production)
    w_bd, G, gb = prepare_conv_branch_constants(conv_w, bn_gamma, bn_beta, m=m)

    out2d = pl.pallas_call(
        functools.partial(_conv_branch_kernel, batch=B, t_out=t_out, m=m,
                          cout=cout, pool_h=pool_h, eps=eps),
        out_shape=jax.ShapeDtypeStruct((B * H, cm), jnp.float32),
        in_specs=[pl.BlockSpec(memory_space=pltpu.MemorySpace.VMEM)] * 4,
        out_specs=pl.BlockSpec(memory_space=pltpu.MemorySpace.VMEM),
    )(xcol, w_bd, G, gb)

    # back to PyTorch layout: (B, H, Cout, m) -> (B, Cout, H, m) -> (B, Cout*H, m)
    return jnp.transpose(out2d.reshape(B, H, cout, m),
                         (0, 2, 1, 3)).reshape(B, cout * H, m)


def conv_branch_ref(x_nchw, conv_w, conv_b, bn_gamma, bn_beta, *,
                    dilation_factor=2, hidP=1, isPool=True, eps=1e-5):
    """Pure-JAX reference mirroring the PyTorch module."""
    y = jax.lax.conv_general_dilated(
        x_nchw.astype(jnp.float32), conv_w.astype(jnp.float32),
        window_strides=(1, 1), padding="VALID",
        rhs_dilation=(dilation_factor, 1),
        dimension_numbers=("NCHW", "OIHW", "NCHW"),
        precision=jax.lax.Precision.HIGHEST)
    y = y + conv_b[None, :, None, None]
    mean = jnp.mean(y, axis=(0, 2, 3), keepdims=True)
    var = jnp.mean((y - mean) ** 2, axis=(0, 2, 3), keepdims=True)
    y = (y - mean) / jnp.sqrt(var + eps)
    y = y * bn_gamma[None, :, None, None] + bn_beta[None, :, None, None]
    B, cout, t_out, m = y.shape
    if isPool and hidP is not None:
        cols = []
        for i in range(hidP):
            s = (i * t_out) // hidP
            e = -((-(i + 1) * t_out) // hidP)
            cols.append(jnp.max(y[:, :, s:e, :], axis=2, keepdims=True))
        y = jnp.concatenate(cols, axis=2)
    return jnp.tanh(y.reshape(B, -1, m))


if __name__ == "__main__":
    # Shapes consistent with ConvBranch(m=16, in_channels=4, out_channels=8,
    # kernel_size=3, dilation_factor=2, hidP=2)
    B, Cin, Cout, T, M, K, DIL, HIDP = 2, 4, 8, 16, 16, 3, 2, 2

    key = jax.random.PRNGKey(0)
    kx, kw, kb, kg, kbe = jax.random.split(key, 5)
    x = jax.random.normal(kx, (B, Cin, T, M), dtype=jnp.float32)
    conv_w = jax.random.normal(kw, (Cout, Cin, K, 1), dtype=jnp.float32) * 0.3
    conv_b = jax.random.normal(kb, (Cout,), dtype=jnp.float32) * 0.1
    bn_gamma = jax.random.uniform(kg, (Cout,), dtype=jnp.float32,
                                  minval=0.5, maxval=1.5)
    bn_beta = jax.random.normal(kbe, (Cout,), dtype=jnp.float32) * 0.1

    # pooled branch (isPool=True, hidP=2)
    out = conv_branch(x, conv_w, conv_b, bn_gamma, bn_beta,
                      dilation_factor=DIL, hidP=HIDP, isPool=True)
    out = jax.block_until_ready(out)
    ref = conv_branch_ref(x, conv_w, conv_b, bn_gamma, bn_beta,
                          dilation_factor=DIL, hidP=HIDP, isPool=True)
    ref = jax.block_until_ready(ref)
    assert out.shape == (B, Cout * HIDP, M), out.shape
    max_err = float(jnp.max(jnp.abs(out - ref)))
    assert max_err < 5e-2, f"pooled mismatch vs reference, max abs err = {max_err}"

    # non-pooled branch (isPool=False)
    out_np = conv_branch(x, conv_w, conv_b, bn_gamma, bn_beta,
                         dilation_factor=DIL, hidP=None, isPool=False)
    out_np = jax.block_until_ready(out_np)
    ref_np = conv_branch_ref(x, conv_w, conv_b, bn_gamma, bn_beta,
                             dilation_factor=DIL, hidP=None, isPool=False)
    ref_np = jax.block_until_ready(ref_np)
    t_out = T - DIL * (K - 1)
    assert out_np.shape == (B, Cout * t_out, M), out_np.shape
    max_err_np = float(jnp.max(jnp.abs(out_np - ref_np)))
    assert max_err_np < 5e-2, f"no-pool mismatch vs reference, max abs err = {max_err_np}"

    print("KERNEL_OK")
</pallas_src>

<mosaic_0001>
module attributes {stable_mosaic.version = 11 : i64} {
  func.func @_conv_branch_kernel(%arg0: memref<24x192xbf16, #tpu.memory_space<vmem>>, %arg1: memref<192x128xbf16, #tpu.memory_space<vmem>>, %arg2: memref<128x128xf32, #tpu.memory_space<vmem>>, %arg3: memref<2x128xf32, #tpu.memory_space<vmem>>, %arg4: memref<4x128xf32, #tpu.memory_space<vmem>>) attributes {dimension_semantics = [], scalar_prefetch = 0 : i64, scratch_operands = 0 : i64, tpu.core_type = #tpu.core_type<tc>} {
    %c0 = arith.constant 0 : index
    %c0_0 = arith.constant 0 : index
    %0 = vector.load %arg0[%c0, %c0_0] : memref<24x192xbf16, #tpu.memory_space<vmem>>, vector<24x192xbf16>
    %c0_1 = arith.constant 0 : index
    %c0_2 = arith.constant 0 : index
    %1 = vector.load %arg1[%c0_1, %c0_2] : memref<192x128xbf16, #tpu.memory_space<vmem>>, vector<192x128xbf16>
    %cst = arith.constant dense<0.000000e+00> : vector<24x128xf32>
    %2 = tpu.matmul %0, %1, %cst {dimension_numbers = #tpu.dot_dimension_numbers<[1], [0], [0], [1], [0, 0, 1, 1], [], []>} : vector<24x192xbf16>, vector<192x128xbf16>, vector<24x128xf32> -> vector<24x128xf32>
    %cst_3 = arith.constant dense<0.000000e+00> : vector<128xf32>
    %3 = vector.multi_reduction <add>, %2, %cst_3 [0] : vector<24x128xf32> to vector<128xf32>
    %4 = vector.shape_cast %3 : vector<128xf32> to vector<1x128xf32>
    %5 = arith.mulf %2, %2 : vector<24x128xf32>
    %cst_4 = arith.constant dense<0.000000e+00> : vector<128xf32>
    %6 = vector.multi_reduction <add>, %5, %cst_4 [0] : vector<24x128xf32> to vector<128xf32>
    %7 = vector.shape_cast %6 : vector<128xf32> to vector<1x128xf32>
    %8 = tpu.concatenate %4, %7 in 0 : vector<1x128xf32>, vector<1x128xf32> -> vector<2x128xf32>
    %c0_5 = arith.constant 0 : index
    %c0_6 = arith.constant 0 : index
    %9 = vector.load %arg2[%c0_5, %c0_6] : memref<128x128xf32, #tpu.memory_space<vmem>>, vector<128x128xf32>
    %cst_7 = arith.constant dense<0.000000e+00> : vector<2x128xf32>
    %10 = tpu.matmul %8, %9, %cst_7 {dimension_numbers = #tpu.dot_dimension_numbers<[1], [0], [0], [1], [0, 0, 1, 1], [], []>} : vector<2x128xf32>, vector<128x128xf32>, vector<2x128xf32> -> vector<2x128xf32>
    %11 = vector.extract_strided_slice %10 {offsets = [0, 0], sizes = [1, 128], strides = [1, 1]} : vector<2x128xf32> to vector<1x128xf32>
    %cst_8 = arith.constant 0.00260416674 : f32
    %12 = vector.broadcast %cst_8 : f32 to vector<1x128xf32>
    %13 = arith.mulf %11, %12 : vector<1x128xf32>
    %14 = vector.extract_strided_slice %10 {offsets = [1, 0], sizes = [1, 128], strides = [1, 1]} : vector<2x128xf32> to vector<1x128xf32>
    %cst_9 = arith.constant 0.00260416674 : f32
    %15 = vector.broadcast %cst_9 : f32 to vector<1x128xf32>
    %16 = arith.mulf %14, %15 : vector<1x128xf32>
    %17 = arith.mulf %13, %13 : vector<1x128xf32>
    %18 = arith.subf %16, %17 : vector<1x128xf32>
    %cst_10 = arith.constant 0.000000e+00 : f32
    %19 = vector.broadcast %cst_10 : f32 to vector<1x128xf32>
    %20 = arith.maximumf %18, %19 : vector<1x128xf32>
    %c0_11 = arith.constant 0 : index
    %c0_12 = arith.constant 0 : index
    %21 = vector.load %arg3[%c0_11, %c0_12] : memref<2x128xf32, #tpu.memory_space<vmem>>, vector<2x128xf32>
    %22 = vector.extract_strided_slice %21 {offsets = [0, 0], sizes = [1, 128], strides = [1, 1]} : vector<2x128xf32> to vector<1x128xf32>
    %cst_13 = arith.constant 9.99999974E-6 : f32
    %23 = vector.broadcast %cst_13 : f32 to vector<1x128xf32>
    %24 = arith.addf %20, %23 : vector<1x128xf32>
    %25 = math.rsqrt %24 : vector<1x128xf32>
    %26 = arith.mulf %22, %25 : vector<1x128xf32>
    %27 = vector.extract_strided_slice %21 {offsets = [1, 0], sizes = [1, 128], strides = [1, 1]} : vector<2x128xf32> to vector<1x128xf32>
    %28 = arith.mulf %13, %26 : vector<1x128xf32>
    %29 = arith.subf %27, %28 : vector<1x128xf32>
    %30 = vector.broadcast %26 : vector<1x128xf32> to vector<24x128xf32>
    %31 = arith.mulf %2, %30 : vector<24x128xf32>
    %32 = vector.broadcast %29 : vector<1x128xf32> to vector<24x128xf32>
    %33 = arith.addf %31, %32 : vector<24x128xf32>
    %34 = vector.shape_cast %33 : vector<24x128xf32> to vector<2x2x6x128xf32>
    %cst_14 = arith.constant dense<0xFF800000> : vector<2x2x128xf32>
    %35 = vector.multi_reduction <maximumf>, %34, %cst_14 [2] : vector<2x2x6x128xf32> to vector<2x2x128xf32>
    %36 = vector.shape_cast %35 : vector<2x2x128xf32> to vector<4x128xf32>
    %37 = math.tanh %36 : vector<4x128xf32>
    %c0_15 = arith.constant 0 : index
    %c0_16 = arith.constant 0 : index
    %38 = vector.load %arg4[%c0_15, %c0_16] : memref<4x128xf32, #tpu.memory_space<vmem>>, vector<4x128xf32>
    tpu.vector_store %arg4[%c0_15, %c0_16], %37 {strides = array<i32>} : memref<4x128xf32, #tpu.memory_space<vmem>>, vector<4x128xf32>,
    return
  }
}

</mosaic_0001>

<llo_original>
// kernel: tpu_custom_call.1
$region0: #{tpu_custom_call.1}
  #allocation0 [shape = 'u32[]', space=smem, size = 0x4, offset = 0x4, fixed_abs, tag = 'smem constant byte address 0x4 - core index']
  #allocation1 [shape = 'u32[72,128]{1,0:T(1,128)}', space=vmem, size = 0x9000, scoped, tag = 'internal scratch']
  %s0 = inlined_call_operand.hbm [shape: bf16[24,192], index: 0, kind: input, shape index: {}]
  %s1 = inlined_call_operand.hbm [shape: bf16[192,128], index: 1, kind: input, shape index: {}]
  %s2 = inlined_call_operand.hbm [shape: f32[128,128], index: 2, kind: input, shape index: {}]
  %s3 = inlined_call_operand.vmem [shape: f32[2,128], index: 3, kind: input, shape index: {}]
  %s4 = inlined_call_operand.hbm [shape: f32[4,128], index: 4, kind: output, shape index: {}]
  %s5 = sld [smem:[#allocation0]]
  $region38: #{tpu_custom_call.1} parent=0
    _
  %s7 = ssub.s32 1, %s5
  %s8 = scalar_select 0, %s7, %s5
  $region1: #{tpu_custom_call.1} parent=0
    #allocation2 [shape = 'u8[12288]{0}', space=vmem, size = 0x3000, scoped, tag = 'input window, operand 0, single buffered']
    #allocation3 [shape = 's32[1]{0}', space=sflag, size = 0x4, scoped, tag = 'scoped memory for tpu_custom_call.1']
    #allocation4 [shape = 's32[1]{0}', space=sflag, size = 0x4, scoped, tag = 'scoped memory for tpu_custom_call.1']
    #allocation5 [shape = 'u8[49152]{0}', space=vmem, size = 0xc000, scoped, tag = 'input window, operand 1, single buffered']
    #allocation6 [shape = 's32[1]{0}', space=sflag, size = 0x4, scoped, tag = 'scoped memory for tpu_custom_call.1']
    #allocation7 [shape = 'u8[65536]{0}', space=vmem, size = 0x10000, scoped, tag = 'input window, operand 2, single buffered']
    #allocation8 [shape = 'u8[2048]{0}', space=vmem, size = 0x800, scoped, tag = 'output window, operand 0, single buffered']
    %9 = vsyncpa [#allocation3], 0
    %10 = vsyncpa [#allocation6], 0
    %11 = vsyncpa [#allocation4], 0
    // Predicated region
    $region2: #{tpu_custom_call.1} parent=1 // pred_check
      _
    $region3: #{tpu_custom_call.1} parent=1 // pred_check_branch
      %13 = sbr.rel (0) target = $region5
    $region4: #{tpu_custom_call.1} parent=1 // pred_region
      %15 = vsyncadd [#allocation3], 0
      %s16 = sshll.u32 %s0, 4
      %s17 = int_to_ptr.hbm [resolvable:$true] %s16
      %s18 = sshll.u32 [#allocation2], 4
      %s19 = int_to_ptr.vmem [resolvable:$true] %s18
      %24 = dma.hbm_to_vmem [thread:$0]  %s17, 384, %s19, [#allocation3], 128, 128, 8
    $region5: #{tpu_custom_call.1} parent=1 // pred_fallthru
      _
    // Predicated region
    $region6: #{tpu_custom_call.1} parent=1 // pred_check
      _
    $region7: #{tpu_custom_call.1} parent=1 // pred_check_branch
      %26 = sbr.rel (0) target = $region9
    $region8: #{tpu_custom_call.1} parent=1 // pred_region
      %28 = vsyncadd [#allocation6], 0
      %s29 = sshll.u32 %s1, 4
      %s30 = int_to_ptr.hbm [resolvable:$true] %s29
      %s31 = sshll.u32 [#allocation5], 4
      %s32 = int_to_ptr.vmem [resolvable:$true] %s31
      %37 = dma.hbm_to_vmem [thread:$0]  %s30, 1536, %s32, [#allocation6], 64, 64, 4
    $region9: #{tpu_custom_call.1} parent=1 // pred_fallthru
      _
    // Predicated region
    $region10: #{tpu_custom_call.1} parent=1 // pred_check
      _
    $region11: #{tpu_custom_call.1} parent=1 // pred_check_branch
      %39 = sbr.rel (0) target = $region13
    $region12: #{tpu_custom_call.1} parent=1 // pred_region
      %41 = vsyncadd [#allocation6], 0
      %s42 = sshll.u32 %s2, 4
      %s43 = int_to_ptr.hbm [resolvable:$true] %s42
      %s44 = sshll.u32 [#allocation7], 4
      %s45 = int_to_ptr.vmem [resolvable:$true] %s44
      %50 = dma.hbm_to_vmem [thread:$0]  %s43, 2048, %s45, [#allocation6], 128, 128, 8
    $region13: #{tpu_custom_call.1} parent=1 // pred_fallthru
      _
    // Predicated region
    $region14: #{tpu_custom_call.1} parent=1 // pred_check
      _
    $region15: #{tpu_custom_call.1} parent=1 // pred_check_branch
      %52 = sbr.rel (0) target = $region17
    $region16: #{tpu_custom_call.1} parent=1 // pred_region
      _
    $region17: #{tpu_custom_call.1} parent=1 // pred_fallthru
      _
    // Predicated region
    $region18: #{tpu_custom_call.1} parent=1 // pred_check
      _
    $region19: #{tpu_custom_call.1} parent=1 // pred_check_branch
      %54 = sbr.rel (0) target = $region21
    $region20: #{tpu_custom_call.1} parent=1 // pred_region
      %56 = dma.done [#allocation3], 384
    $region21: #{tpu_custom_call.1} parent=1 // pred_fallthru
      _
    // Predicated region
    $region22: #{tpu_custom_call.1} parent=1 // pred_check
      _
    $region23: #{tpu_custom_call.1} parent=1 // pred_check_branch
      %58 = sbr.rel (0) target = $region25
    $region24: #{tpu_custom_call.1} parent=1 // pred_region
      %60 = dma.done [#allocation6], 1536
    $region25: #{tpu_custom_call.1} parent=1 // pred_fallthru
      _
    // Predicated region
    $region26: #{tpu_custom_call.1} parent=1 // pred_check
      _
    $region27: #{tpu_custom_call.1} parent=1 // pred_check_branch
      %62 = sbr.rel (0) target = $region29
    $region28: #{tpu_custom_call.1} parent=1 // pred_region
      %64 = dma.done [#allocation6], 2048
    $region29: #{tpu_custom_call.1} parent=1 // pred_fallthru
      _
    %v66 = vld [vmem:[#allocation2] sm:$0xff]
    %v67 = vld [vmem:[#allocation2 + $0x8] sm:$0xff]
    %v68 = vld [vmem:[#allocation2 + $0x10] sm:$0xff]
    %v69 = vld [vmem:[#allocation5] sm:$0xf]
    %v70 = vld [vmem:[#allocation5 + $0x4] sm:$0xf]
    %v71 = vld [vmem:[#allocation5 + $0x8] sm:$0xf]
    %v72 = vld [vmem:[#allocation5 + $0xc] sm:$0xf]
    %v73 = vld [vmem:[#allocation5 + $0x10] sm:$0xf]
    %v74 = vld [vmem:[#allocation5 + $0x14] sm:$0xf]
    %v75 = vld [vmem:[#allocation5 + $0x18] sm:$0xf]
    %v76 = vld [vmem:[#allocation5 + $0x1c] sm:$0xf]
    %v77 = vld [vmem:[#allocation5 + $0x20] sm:$0xf]
    %v78 = vld [vmem:[#allocation5 + $0x24] sm:$0xf]
    %v79 = vld [vmem:[#allocation5 + $0x28] sm:$0xf]
    %v80 = vld [vmem:[#allocation5 + $0x2c] sm:$0xf]
    %v81 = vld [vmem:[#allocation5 + $0x30] sm:$0xf]
    %v82 = vld [vmem:[#allocation5 + $0x34] sm:$0xf]
    %v83 = vld [vmem:[#allocation5 + $0x38] sm:$0xf]
    %v84 = vld [vmem:[#allocation5 + $0x3c] sm:$0xf]
    %v85 = vld [vmem:[#allocation5 + $0x40] sm:$0xf]
    %v86 = vld [vmem:[#allocation5 + $0x44] sm:$0xf]
    %v87 = vld [vmem:[#allocation5 + $0x48] sm:$0xf]
    %v88 = vld [vmem:[#allocation5 + $0x4c] sm:$0xf]
    %v89 = vld [vmem:[#allocation5 + $0x50] sm:$0xf]
    %v90 = vld [vmem:[#allocation5 + $0x54] sm:$0xf]
    %v91 = vld [vmem:[#allocation5 + $0x58] sm:$0xf]
    %v92 = vld [vmem:[#allocation5 + $0x5c] sm:$0xf]
    %v96 = vunpack.c.l.b16 %v66
    %v97 = vunpack.c.h.b16 %v66
    %v98 = vunpack.c.l.b16 %v67
    %v99 = vunpack.c.h.b16 %v67
    %v100 = vunpack.c.l.b16 %v68
    %v101 = vunpack.c.h.b16 %v68
    %v102 = vpack.c.b16 %v98, %v96
    %v103 = vpack.c.b16 %v99, %v97
    %v104 = vpack.c.b16 %v100, %v100
    %v105 = vpack.c.b16 %v101, %v101
    %v132 = vunpack.c.l.b16 %v69
    %v133 = vunpack.c.l.b16 %v70
    %v134 = vunpack.c.l.b16 %v71
    %v135 = vunpack.c.l.b16 %v72
    %v136 = vunpack.c.l.b16 %v73
    %v137 = vunpack.c.l.b16 %v74
    %v138 = vunpack.c.l.b16 %v75
    %v139 = vunpack.c.l.b16 %v76
    %v140 = vunpack.c.l.b16 %v77
    %v141 = vunpack.c.l.b16 %v78
    %v142 = vunpack.c.l.b16 %v79
    %v143 = vunpack.c.l.b16 %v80
    %v144 = vunpack.c.l.b16 %v81
    %v145 = vunpack.c.l.b16 %v82
    %v146 = vunpack.c.l.b16 %v83
    %v147 = vunpack.c.l.b16 %v84
    %v148 = vunpack.c.l.b16 %v85
    %v149 = vunpack.c.l.b16 %v86
    %v150 = vunpack.c.l.b16 %v87
    %v151 = vunpack.c.l.b16 %v88
    %v152 = vunpack.c.l.b16 %v89
    %v153 = vunpack.c.l.b16 %v90
    %v154 = vunpack.c.l.b16 %v91
    %v155 = vunpack.c.l.b16 %v92
    %v156 = vpack.c.b16 %v133, %v132
    %v157 = vpack.c.b16 %v135, %v134
    %v158 = vpack.c.b16 %v137, %v136
    %v159 = vpack.c.b16 %v139, %v138
    %v160 = vpack.c.b16 %v141, %v140
    %v161 = vpack.c.b16 %v143, %v142
    %v162 = vpack.c.b16 %v145, %v144
    %v163 = vpack.c.b16 %v147, %v146
    %v164 = vpack.c.b16 %v149, %v148
    %v165 = vpack.c.b16 %v151, %v150
    %v166 = vpack.c.b16 %v153, %v152
    %v167 = vpack.c.b16 %v155, %v154
    %vm180 = vcmask 523264
    %v182 = vsel %vm180, %v103, 0
    %v185 = vsel %vm180, %v105, 0
    %187 = vmatpush.bf16.msra.mxu0 %v163
    %188 = vmatpush.bf16.msra.mxu0 %v162
    %189 = vmatpush.bf16.msra.mxu0 %v161
    %190 = vmatpush.bf16.msra.mxu0 %v160
    %191 = vmatpush.bf16.msra.mxu0 %v159
    %192 = vmatpush.bf16.msra.mxu0 %v158
    %193 = vmatpush.bf16.msra.mxu0 %v157
    %194 = vmatpush.bf16.msra.mxu0 %v156
    %195 = vmatmul.bf16.gmra.mxu0 %v102
    %v196 = vpop.f32.mrf.mxu0
    %v197 = vadd.f32 0.0, %v196
    %v198 = vpop.f32.mrf.mxu0
    %v199 = vadd.f32 0.0, %v198
    %200 = vmatmul.bf16.gmra.mxu0 %v104
    %v201 = vpop.f32.mrf.mxu0
    %v202 = vadd.f32 0.0, %v201
    %v203 = vpop.f32.mrf.mxu0
    %204 = vdwg.mxu0
    %205 = vmatpush.bf16.msra.mxu0 0
    %206 = vmatpush.bf16.msra.mxu0 0
    %207 = vmatpush.bf16.msra.mxu0 0
    %208 = vmatpush.bf16.msra.mxu0 0
    %209 = vmatpush.bf16.msra.mxu0 %v167
    %210 = vmatpush.bf16.msra.mxu0 %v166
    %211 = vmatpush.bf16.msra.mxu0 %v165
    %212 = vmatpush.bf16.msra.mxu0 %v164
    %213 = vmatmul.bf16.gmra.mxu0 %v182
    %v214 = vpop.f32.mrf.mxu0
    %v215 = vadd.f32 %v197, %v214
    %v216 = vpop.f32.mrf.mxu0
    %v217 = vadd.f32 %v199, %v216
    %218 = vmatmul.bf16.gmra.mxu0 %v185
    %v219 = vpop.f32.mrf.mxu0
    %v220 = vadd.f32 %v202, %v219
    %v221 = vpop.f32.mrf.mxu0
    %222 = vdwg.mxu0
    %v223 = vadd.f32 %v215, %v217
    %v224 = vadd.f32 %v223, %v220
    %v225 = vrot.slane %v224, 4
    %v226 = vadd.f32 %v224, %v225
    %v227 = vrot.slane %v226, 2
    %v228 = vadd.f32 %v226, %v227
    %v229 = vrot.slane %v228, 1
    %v230 = vadd.f32 %v228, %v229
    %v231 = vmul.f32 %v215, %v215
    %v232 = vmul.f32 %v217, %v217
    %v233 = vmul.f32 %v220, %v220
    %v234 = vadd.f32 %v231, %v232
    %v235 = vadd.f32 %v234, %v233
    %v236 = vrot.slane %v235, 4
    %v237 = vadd.f32 %v235, %v236
    %v238 = vrot.slane %v237, 2
    %v239 = vadd.f32 %v237, %v238
    %v240 = vrot.slane %v239, 1
    %v241 = vadd.f32 %v239, %v240
    %vm242 = vcmask 1040384
    %v243 = vsel %vm242, %v230, %v241
    %v244 = vld [vmem:[#allocation7] sm:$0xff]
    %v245 = vld [vmem:[#allocation7 + $0x8] sm:$0xff]
    %v246 = vld [vmem:[#allocation7 + $0x10] sm:$0xff]
    %v247 = vld [vmem:[#allocation7 + $0x18] sm:$0xff]
    %v248 = vld [vmem:[#allocation7 + $0x20] sm:$0xff]
    %v249 = vld [vmem:[#allocation7 + $0x28] sm:$0xff]
    %v250 = vld [vmem:[#allocation7 + $0x30] sm:$0xff]
    %v251 = vld [vmem:[#allocation7 + $0x38] sm:$0xff]
    %v252 = vld [vmem:[#allocation7 + $0x40] sm:$0xff]
    %v253 = vld [vmem:[#allocation7 + $0x48] sm:$0xff]
    %v254 = vld [vmem:[#allocation7 + $0x50] sm:$0xff]
    %v255 = vld [vmem:[#allocation7 + $0x58] sm:$0xff]
    %v256 = vld [vmem:[#allocation7 + $0x60] sm:$0xff]
    %v257 = vld [vmem:[#allocation7 + $0x68] sm:$0xff]
    %v258 = vld [vmem:[#allocation7 + $0x70] sm:$0xff]
    %v259 = vld [vmem:[#allocation7 + $0x78] sm:$0xff]
    %260 = vmatpush.msra.mxu0 %v259
    %261 = vmatpush.msra.mxu0 %v258
    %262 = vmatpush.msra.mxu0 %v257
    %263 = vmatpush.msra.mxu0 %v256
    %264 = vmatpush.msra.mxu0 %v255
    %265 = vmatpush.msra.mxu0 %v254
    %266 = vmatpush.msra.mxu0 %v253
    %267 = vmatpush.msra.mxu0 %v252
    %268 = vmatpush.msra.mxu0 %v251
    %269 = vmatpush.msra.mxu0 %v250
    %270 = vmatpush.msra.mxu0 %v249
    %271 = vmatpush.msra.mxu0 %v248
    %272 = vmatpush.msra.mxu0 %v247
    %273 = vmatpush.msra.mxu0 %v246
    %274 = vmatpush.msra.mxu0 %v245
    %275 = vmatpush.msra.mxu0 %v244
    %276 = vmatmul.f32.gmra.mxu0 %v243
    %v277 = vpop.f32.mrf.mxu0
    %v278 = vadd.f32 0.0, %v277
    %279 = vdwg.mxu0
    %v280 = vmul.f32 %v278, 0.0026041667
    %v281 = vmul.f32 %v280, %v280
    %v283 = vrot.slane %v281, 7
    %v285 = vsub.f32 %v280, %v283
    %v286 = vmax.f32 %v285, 0.0
    %v287 = vld [vmem:[%s3] sm:$0x3]
    %v288 = vadd.f32 %v286, 1e-05
    %v289 = vrsqrt.pop %v288
    %v290 = vmul.f32 %v289, %v288
    %v291 = vmul.f32 %v290, %v289
    %v292 = vmul.f32 0.5, %v291
    %v293 = vsub.f32 1.5, %v292
    %v294 = vmul.f32 %v289, %v293
    %vm295 = vweird.f32 %v288
    %vm296 = vweird.f32 %v289
    %vm297 = vmor %vm295, %vm296
    %v298 = vsel %vm297, %v289, %v294
    %v300 = vrot.slane %v298, 1
    %v302 = vmul.f32 %v287, %v300
    %v303 = vmul.f32 %v280, %v302
    %v305 = vrot.slane %v303, 7
    %v307 = vsub.f32 %v287, %v305
    %v308 = vperm.slane %v302, 0
    %v309 = vmul.f32 %v215, %v308
    %v310 = vmul.f32 %v217, %v308
    %v311 = vmul.f32 %v220, %v308
    %v312 = vperm.slane %v307, 1
    %v313 = vadd.f32 %v309, %v312
    %v314 = vadd.f32 %v310, %v312
    %v315 = vadd.f32 %v311, %v312
    %v319 = vrot.slane %v313, 2
    %v320 = vrot.slane %v313, 4
    %v321 = vrot.slane %v313, 6
    %v322 = vrot.slane %v314, 2
    %v323 = vrot.slane %v314, 4
    %v324 = vrot.slane %v314, 6
    %v325 = vrot.slane %v315, 2
    %v326 = vrot.slane %v315, 4
    %v327 = vrot.slane %v315, 6
    %328 = vst [vmem:[#allocation1] ss:$4 sm:$0xff] %v313
    %s329 = scalar_lea.vmem [#allocation1], 1
    %330 = vst [vmem:[%s329] ss:$4 sm:$0xff] %v319
    %s331 = scalar_lea.vmem [#allocation1], 2
    %332 = vst [vmem:[%s331] ss:$4 sm:$0xff] %v320
    %v333 = vld.sshfl [vmem:[#allocation1] sm:$0xff pattern:$0x73625140]
    %s334 = scalar_lea.vmem [#allocation1], 32
    %335 = vst [vmem:[%s334] ss:$4 sm:$0xff] %v321
    %s336 = scalar_lea.vmem [#allocation1], 33
    %337 = vst [vmem:[%s336] ss:$4 sm:$0xff] %v314
    %s338 = scalar_lea.vmem [#allocation1], 34
    %339 = vst [vmem:[%s338] ss:$4 sm:$0xff] %v322
    %v340 = vld.sshfl [vmem:[#allocation1 + $0x20] sm:$0xff pattern:$0x73625140]
    %341 = vst [vmem:[#allocation1] ss:$4 sm:$0xff] %v323
    %342 = vst [vmem:[%s329] ss:$4 sm:$0xff] %v324
    %343 = vst [vmem:[%s331] ss:$4 sm:$0xff] %v315
    %v344 = vld.sshfl [vmem:[#allocation1] sm:$0xff pattern:$0x73625140]
    %345 = vst [vmem:[%s334] ss:$4 sm:$0xff] %v325
    %346 = vst [vmem:[%s336] ss:$4 sm:$0xff] %v326
    %347 = vst [vmem:[%s338] ss:$4 sm:$0xff] %v327
    %v348 = vld.sshfl [vmem:[#allocation1 + $0x20] sm:$0xff pattern:$0x73625140]
    %vm353 = vcmask 1045504
    %v354 = vsel %vm353, %v333, -inf
    %v355 = vrot.slane %v354, 4
    %v356 = vmax.f32 %v354, %v355
    %v357 = vrot.slane %v356, 2
    %v358 = vmax.f32 %v356, %v357
    %v359 = vrot.slane %v358, 1
    %v360 = vmax.f32 %v358, %v359
    %v361 = vsel %vm353, %v340, -inf
    %v362 = vrot.slane %v361, 4
    %v363 = vmax.f32 %v361, %v362
    %v364 = vrot.slane %v363, 2
    %v365 = vmax.f32 %v363, %v364
    %v366 = vrot.slane %v365, 1
    %v367 = vmax.f32 %v365, %v366
    %v368 = vsel %vm353, %v344, -inf
    %v369 = vrot.slane %v368, 4
    %v370 = vmax.f32 %v368, %v369
    %v371 = vrot.slane %v370, 2
    %v372 = vmax.f32 %v370, %v371
    %v373 = vrot.slane %v372, 1
    %v374 = vmax.f32 %v372, %v373
    %v375 = vsel %vm353, %v348, -inf
    %v376 = vrot.slane %v375, 4
    %v377 = vmax.f32 %v375, %v376
    %v378 = vrot.slane %v377, 2
    %v379 = vmax.f32 %v377, %v378
    %v380 = vrot.slane %v379, 1
    %v381 = vmax.f32 %v379, %v380
    %v382 = vtanh.pop %v360
    %v383 = vtanh.pop %v367
    %v384 = vtanh.pop %v374
    %v385 = vtanh.pop %v381
    %vm390 = vcmask 1041409
    %v391 = vsel %vm390, %v383, %v382
    %vm392 = vcmask 1042434
    %v393 = vsel %vm392, %v384, %v391
    %vm394 = vcmask 1043459
    %v395 = vsel %vm394, %v385, %v393
    %397 = vst [vmem:[#allocation8] sm:$0xf] %v395
    // Predicated region
    $region30: #{tpu_custom_call.1} parent=1 // pred_check
      _
    $region31: #{tpu_custom_call.1} parent=1 // pred_check_branch
      %399 = sbr.rel (0) target = $region33
    $region32: #{tpu_custom_call.1} parent=1 // pred_region
      %401 = vsyncadd [#allocation4], 0
      %s403 = sshll.u32 [#allocation8], 4
      %s404 = int_to_ptr.vmem [resolvable:$true] %s403
      %s405 = sshll.u32 %s4, 4
      %s406 = int_to_ptr.hbm [resolvable:$true] %s405
      %408 = dma.vmem_to_hbm [thread:$0]  %s404, 64, %s406, [#allocation4]
    $region33: #{tpu_custom_call.1} parent=1 // pred_fallthru
      _
    // Predicated region
    $region34: #{tpu_custom_call.1} parent=1 // pred_check
      _
    $region35: #{tpu_custom_call.1} parent=1 // pred_check_branch
      %410 = sbr.rel (0) target = $region37
    $region36: #{tpu_custom_call.1} parent=1 // pred_region
      %412 = dma.done [#allocation4], 64
    $region37: #{tpu_custom_call.1} parent=1 // pred_fallthru
      _
    %413 = vsyncpa [#allocation3], 1
    %414 = vsyncpa [#allocation6], 1
    %415 = vsyncpa [#allocation4], 1

</llo_original>
